<compile_context>
chip_gen: v5e
topology: v5e:2x2
jax: 0.10.0
libtpu: 0.0.40
codegen_flags: <defaults>
</compile_context>

<pallas_src>
import functools

import numpy as np
import jax
import jax.numpy as jnp
from jax.experimental import pallas as pl
from jax.experimental.pallas import tpu as pltpu


# ----------------------------------------------------------------------------
# Host-side mask sampling: exact replica of MADE._sample_masks (numpy RNG).
# ----------------------------------------------------------------------------
def sample_made_masks(input_dim, hidden_dims, n_masks=1, mask_seed=0):
    rng = np.random.RandomState(seed=mask_seed % n_masks)
    conn = [rng.permutation(input_dim)]
    for i, dim in enumerate(hidden_dims):
        low = 0 if i == 0 else np.min(conn[i - 1])
        high = input_dim - 1
        conn.append(rng.randint(low, high, size=dim))
    conn.append(np.copy(conn[0]))
    masks = [conn[i - 1][None, :] <= conn[i][:, None] for i in range(1, len(conn) - 1)]
    masks.append(conn[-2][None, :] < conn[-1][:, None])
    # Same (out_features, in_features) layout as the PyTorch buffers.
    return [m.astype(np.float32) for m in masks]


# ----------------------------------------------------------------------------
# Pallas kernel: fused masked-MLP forward for one batch tile.
#   refs = (x_ref, w0, b0, w1, b1, ..., w_{L-1}, b_{L-1}, out_ref)
#   w_i already masked, padded and stored (d_in, d_out); b_i stored (1, d_out).
# ----------------------------------------------------------------------------
def _made_mlp_kernel(*refs):
    x_ref = refs[0]
    out_ref = refs[-1]
    wb_refs = refs[1:-1]
    n_layers = len(wb_refs) // 2

    h = x_ref[...]                                  # (BT, d_in), lane axis = features
    for i in range(n_layers):
        w = wb_refs[2 * i][...]                     # (d_in_i, d_out_i)
        b = wb_refs[2 * i + 1][...]                 # (1, d_out_i)
        h = jnp.dot(h, w, preferred_element_type=jnp.float32) + b
        if i < n_layers - 1:                        # MADE drops the final ReLU
            h = jnp.maximum(h, 0.0)
    out_ref[...] = h.astype(out_ref.dtype)


def _round_up(v, m):
    return ((v + m - 1) // m) * m


# ----------------------------------------------------------------------------
# Wrapper: flatten (auto_reshape), mask+transpose+pad weights, tile the batch.
# ----------------------------------------------------------------------------
def made_forward(x, weights, biases, masks, *, batch_tile=128):
    """MADE forward.  x: (N, input_dim) or (N, 1, H, W) with H*W == input_dim."""
    orig_shape = x.shape
    x2d = x.reshape(orig_shape[0], -1)
    n, d_in = x2d.shape

    # MaskedLinear: effective weight = weight * mask.  Pre-apply and transpose
    # to (in, out) so the kernel does row-major matmuls.
    w_io = [jnp.transpose(w * m, (1, 0)) for w, m in zip(weights, masks)]
    b_row = [b[None, :] for b in biases]
    d_out = w_io[-1].shape[1]

    # Zero-pad every feature dim to a multiple of 128 so all layers are
    # lane-dense (unmasked vector stores, full-lane MXU operands).  Zero
    # padding is inert: padded input cols are 0, padded weight rows/cols are 0,
    # padded bias entries are 0 and ReLU(0) = 0.
    LANE = 128
    dims = [d_in] + [w.shape[1] for w in w_io]
    dims_p = [_round_up(d, LANE) for d in dims]

    x_p = jnp.pad(x2d, ((0, 0), (0, dims_p[0] - d_in)))
    w_p, b_p = [], []
    for i, (w, b) in enumerate(zip(w_io, b_row)):
        di, do = w.shape
        w_p.append(jnp.pad(w, ((0, dims_p[i] - di), (0, dims_p[i + 1] - do))))
        b_p.append(jnp.pad(b, ((0, 0), (0, dims_p[i + 1] - do))))
    d_out_p = dims_p[-1]

    # Batch tiling: sublane-aligned tiles, at most `batch_tile` rows.
    bt = min(batch_tile, _round_up(n, 8))
    n_pad = (-n) % bt
    if n_pad:
        x_p = jnp.pad(x_p, ((0, n_pad), (0, 0)))
    n_tot = x_p.shape[0]
    grid = (n_tot // bt,)

    in_specs = [pl.BlockSpec((bt, dims_p[0]), lambda i: (i, 0))]
    operands = [x_p]
    for w, b in zip(w_p, b_p):
        # Constant index_map -> weights/biases stay resident in VMEM.
        in_specs.append(pl.BlockSpec(w.shape, lambda i: (0, 0)))
        in_specs.append(pl.BlockSpec(b.shape, lambda i: (0, 0)))
        operands.append(w)
        operands.append(b)

    out_p = pl.pallas_call(
        _made_mlp_kernel,
        out_shape=jax.ShapeDtypeStruct((n_tot, d_out_p), x_p.dtype),
        grid_spec=pltpu.PrefetchScalarGridSpec(
            num_scalar_prefetch=0,
            grid=grid,
            in_specs=in_specs,
            out_specs=pl.BlockSpec((bt, d_out_p), lambda i: (i, 0)),
        ),
        compiler_params=pltpu.CompilerParams(
            dimension_semantics=("parallel",),   # independent batch tiles (v7x 2xTC)
        ),
    )(*operands)

    out2d = out_p[:n, :d_out]
    return out2d.reshape(orig_shape)


# ----------------------------------------------------------------------------
# Pure-JAX reference (mirrors MaskedLinear + nn.Sequential semantics).
# ----------------------------------------------------------------------------
def reference_forward(x, weights, biases, masks):
    orig_shape = x.shape
    h = x.reshape(orig_shape[0], -1)
    n_layers = len(weights)
    for i, (w, b, m) in enumerate(zip(weights, biases, masks)):
        h = h @ (w * m).T + b
        if i < n_layers - 1:
            h = jax.nn.relu(h)
    return h.reshape(orig_shape)


if __name__ == "__main__":
    # Small MADE: images (N, 1, 8, 8) -> input_dim = 64, hidden_dims = [128, 128]
    N, C, H, W = 16, 1, 8, 8
    input_dim = C * H * W
    hidden_dims = [128, 128]
    n_masks = 1

    dims = [input_dim] + hidden_dims + [input_dim]

    key = jax.random.PRNGKey(0)
    keys = jax.random.split(key, 1 + 2 * (len(dims) - 1))
    x = jax.random.normal(keys[0], (N, C, H, W), jnp.float32)

    weights, biases = [], []
    for li in range(len(dims) - 1):
        d_i, d_o = dims[li], dims[li + 1]
        kw, kb = keys[1 + 2 * li], keys[2 + 2 * li]
        weights.append(0.1 * jax.random.normal(kw, (d_o, d_i), jnp.float32))  # (out, in)
        biases.append(0.1 * jax.random.normal(kb, (d_o,), jnp.float32))

    masks = [jnp.asarray(m) for m in
             sample_made_masks(input_dim, hidden_dims, n_masks=n_masks, mask_seed=0)]

    fwd = jax.jit(functools.partial(made_forward, batch_tile=128))
    out = jax.block_until_ready(fwd(x, weights, biases, masks))

    out_ref = reference_forward(x, weights, biases, masks)
    assert out.shape == x.shape
    assert jnp.allclose(out, out_ref, rtol=1e-4, atol=1e-4), "output mismatch"

    # TODO(synk): MADE.sample() (sequential per-dimension Bernoulli ancestral
    # sampling) is a host-driven loop around forward(); not a kernel op.
    print("KERNEL_OK")
</pallas_src>

<mosaic_0001>
module attributes {stable_mosaic.version = 11 : i64} {
  func.func @_made_mlp_kernel(%arg0: i32, %arg1: memref<16x128xf32, #tpu.memory_space<vmem>>, %arg2: memref<128x128xf32, #tpu.memory_space<vmem>>, %arg3: memref<1x128xf32, #tpu.memory_space<vmem>>, %arg4: memref<128x128xf32, #tpu.memory_space<vmem>>, %arg5: memref<1x128xf32, #tpu.memory_space<vmem>>, %arg6: memref<128x128xf32, #tpu.memory_space<vmem>>, %arg7: memref<1x128xf32, #tpu.memory_space<vmem>>, %arg8: memref<16x128xf32, #tpu.memory_space<vmem>>) attributes {dimension_semantics = [#tpu.dimension_semantics<parallel>], iteration_bounds = array<i64: 1>, scalar_prefetch = 0 : i64, scratch_operands = 0 : i64, tpu.core_type = #tpu.core_type<tc>, window_params = [{transform_indices = @transform_0, window_bounds = array<i64: 16, 128>}, {pipeline_mode = #tpu.pipeline_mode<synchronous>, transform_indices = @transform_1, window_bounds = array<i64: 128, 128>}, {pipeline_mode = #tpu.pipeline_mode<synchronous>, transform_indices = @transform_2, window_bounds = array<i64: 1, 128>}, {pipeline_mode = #tpu.pipeline_mode<synchronous>, transform_indices = @transform_3, window_bounds = array<i64: 128, 128>}, {pipeline_mode = #tpu.pipeline_mode<synchronous>, transform_indices = @transform_4, window_bounds = array<i64: 1, 128>}, {pipeline_mode = #tpu.pipeline_mode<synchronous>, transform_indices = @transform_5, window_bounds = array<i64: 128, 128>}, {pipeline_mode = #tpu.pipeline_mode<synchronous>, transform_indices = @transform_6, window_bounds = array<i64: 1, 128>}, {transform_indices = @transform_7, window_bounds = array<i64: 16, 128>}]} {
    %c0 = arith.constant 0 : index
    %c0_0 = arith.constant 0 : index
    %0 = vector.load %arg1[%c0, %c0_0] : memref<16x128xf32, #tpu.memory_space<vmem>>, vector<16x128xf32>
    %c0_1 = arith.constant 0 : index
    %c0_2 = arith.constant 0 : index
    %1 = vector.load %arg2[%c0_1, %c0_2] : memref<128x128xf32, #tpu.memory_space<vmem>>, vector<128x128xf32>
    %c0_3 = arith.constant 0 : index
    %c0_4 = arith.constant 0 : index
    %2 = vector.load %arg3[%c0_3, %c0_4] : memref<1x128xf32, #tpu.memory_space<vmem>>, vector<1x128xf32>
    %cst = arith.constant dense<0.000000e+00> : vector<16x128xf32>
    %3 = tpu.matmul %0, %1, %cst {dimension_numbers = #tpu.dot_dimension_numbers<[1], [0], [0], [1], [0, 0, 1, 1], [], []>} : vector<16x128xf32>, vector<128x128xf32>, vector<16x128xf32> -> vector<16x128xf32>
    %4 = vector.broadcast %2 : vector<1x128xf32> to vector<16x128xf32>
    %5 = arith.addf %3, %4 : vector<16x128xf32>
    %cst_5 = arith.constant 0.000000e+00 : f32
    %6 = vector.broadcast %cst_5 : f32 to vector<16x128xf32>
    %7 = arith.maximumf %5, %6 : vector<16x128xf32>
    %c0_6 = arith.constant 0 : index
    %c0_7 = arith.constant 0 : index
    %8 = vector.load %arg4[%c0_6, %c0_7] : memref<128x128xf32, #tpu.memory_space<vmem>>, vector<128x128xf32>
    %c0_8 = arith.constant 0 : index
    %c0_9 = arith.constant 0 : index
    %9 = vector.load %arg5[%c0_8, %c0_9] : memref<1x128xf32, #tpu.memory_space<vmem>>, vector<1x128xf32>
    %cst_10 = arith.constant dense<0.000000e+00> : vector<16x128xf32>
    %10 = tpu.matmul %7, %8, %cst_10 {dimension_numbers = #tpu.dot_dimension_numbers<[1], [0], [0], [1], [0, 0, 1, 1], [], []>} : vector<16x128xf32>, vector<128x128xf32>, vector<16x128xf32> -> vector<16x128xf32>
    %11 = vector.broadcast %9 : vector<1x128xf32> to vector<16x128xf32>
    %12 = arith.addf %10, %11 : vector<16x128xf32>
    %cst_11 = arith.constant 0.000000e+00 : f32
    %13 = vector.broadcast %cst_11 : f32 to vector<16x128xf32>
    %14 = arith.maximumf %12, %13 : vector<16x128xf32>
    %c0_12 = arith.constant 0 : index
    %c0_13 = arith.constant 0 : index
    %15 = vector.load %arg6[%c0_12, %c0_13] : memref<128x128xf32, #tpu.memory_space<vmem>>, vector<128x128xf32>
    %c0_14 = arith.constant 0 : index
    %c0_15 = arith.constant 0 : index
    %16 = vector.load %arg7[%c0_14, %c0_15] : memref<1x128xf32, #tpu.memory_space<vmem>>, vector<1x128xf32>
    %cst_16 = arith.constant dense<0.000000e+00> : vector<16x128xf32>
    %17 = tpu.matmul %14, %15, %cst_16 {dimension_numbers = #tpu.dot_dimension_numbers<[1], [0], [0], [1], [0, 0, 1, 1], [], []>} : vector<16x128xf32>, vector<128x128xf32>, vector<16x128xf32> -> vector<16x128xf32>
    %18 = vector.broadcast %16 : vector<1x128xf32> to vector<16x128xf32>
    %19 = arith.addf %17, %18 : vector<16x128xf32>
    %c0_17 = arith.constant 0 : index
    %c0_18 = arith.constant 0 : index
    %20 = vector.load %arg8[%c0_17, %c0_18] : memref<16x128xf32, #tpu.memory_space<vmem>>, vector<16x128xf32>
    tpu.vector_store %arg8[%c0_17, %c0_18], %19 {strides = array<i32>} : memref<16x128xf32, #tpu.memory_space<vmem>>, vector<16x128xf32>,
    return
  }
  func.func @transform_0(%arg0: i32) -> (i32, i32) {
    %c0_i32 = arith.constant 0 : i32
    %c0_i32_0 = arith.constant 0 : i32
    return %arg0, %c0_i32 : i32, i32
  }
  func.func @transform_1(%arg0: i32) -> (i32, i32) {
    %c0_i32 = arith.constant 0 : i32
    %c0_i32_0 = arith.constant 0 : i32
    %c0_i32_1 = arith.constant 0 : i32
    return %c0_i32, %c0_i32_0 : i32, i32
  }
  func.func @transform_2(%arg0: i32) -> (i32, i32) {
    %c0_i32 = arith.constant 0 : i32
    %c0_i32_0 = arith.constant 0 : i32
    %c0_i32_1 = arith.constant 0 : i32
    return %c0_i32, %c0_i32_0 : i32, i32
  }
  func.func @transform_3(%arg0: i32) -> (i32, i32) {
    %c0_i32 = arith.constant 0 : i32
    %c0_i32_0 = arith.constant 0 : i32
    %c0_i32_1 = arith.constant 0 : i32
    return %c0_i32, %c0_i32_0 : i32, i32
  }
  func.func @transform_4(%arg0: i32) -> (i32, i32) {
    %c0_i32 = arith.constant 0 : i32
    %c0_i32_0 = arith.constant 0 : i32
    %c0_i32_1 = arith.constant 0 : i32
    return %c0_i32, %c0_i32_0 : i32, i32
  }
  func.func @transform_5(%arg0: i32) -> (i32, i32) {
    %c0_i32 = arith.constant 0 : i32
    %c0_i32_0 = arith.constant 0 : i32
    %c0_i32_1 = arith.constant 0 : i32
    return %c0_i32, %c0_i32_0 : i32, i32
  }
  func.func @transform_6(%arg0: i32) -> (i32, i32) {
    %c0_i32 = arith.constant 0 : i32
    %c0_i32_0 = arith.constant 0 : i32
    %c0_i32_1 = arith.constant 0 : i32
    return %c0_i32, %c0_i32_0 : i32, i32
  }
  func.func @transform_7(%arg0: i32) -> (i32, i32) {
    %c0_i32 = arith.constant 0 : i32
    %c0_i32_0 = arith.constant 0 : i32
    return %arg0, %c0_i32 : i32, i32
  }
}

</mosaic_0001>

<llo_original>
// kernel: mul.5
$region0: #{mul.5}
  #allocation0 [shape = 's32[1]{0}', space=sflag, size = 0x4, scoped, tag = 'scoped memory for mul.5']
  %s0 = inlined_call_operand.vmem [shape: f32[64,128], index: 0, kind: input, shape index: {}]
  %s1 = inlined_call_operand.vmem [shape: f32[64,128], index: 1, kind: input, shape index: {}]
  %s2 = inlined_call_operand.vmem [shape: f32[64,128], index: 2, kind: output, shape index: {}]
  %v3 = vld [vmem:[%s0] sm:$0xff]
  %v4 = vld [vmem:[%s1] sm:$0xff]
  %5 = xla_tuple %v3, %v4
  %6 = xla_tuple %5
  %v7 = vmul.f32 %v3, %v4
  %8 = xla_tuple %v7
  %9 = vst [vmem:[%s2] sm:$0xff] %v7
  %s10 = scalar_lea.vmem %s0, 8
  %v11 = vld [vmem:[%s10] sm:$0xff]
  %s12 = scalar_lea.vmem %s1, 8
  %v13 = vld [vmem:[%s12] sm:$0xff]
  %14 = xla_tuple %v11, %v13
  %15 = xla_tuple %14
  %v16 = vmul.f32 %v11, %v13
  %17 = xla_tuple %v16
  %s18 = scalar_lea.vmem %s2, 8
  %19 = vst [vmem:[%s18] sm:$0xff] %v16
  %s20 = scalar_lea.vmem %s0, 16
  %v21 = vld [vmem:[%s20] sm:$0xff]
  %s22 = scalar_lea.vmem %s1, 16
  %v23 = vld [vmem:[%s22] sm:$0xff]
  %24 = xla_tuple %v21, %v23
  %25 = xla_tuple %24
  %v26 = vmul.f32 %v21, %v23
  %27 = xla_tuple %v26
  %s28 = scalar_lea.vmem %s2, 16
  %29 = vst [vmem:[%s28] sm:$0xff] %v26
  %s30 = scalar_lea.vmem %s0, 24
  %v31 = vld [vmem:[%s30] sm:$0xff]
  %s32 = scalar_lea.vmem %s1, 24
  %v33 = vld [vmem:[%s32] sm:$0xff]
  %34 = xla_tuple %v31, %v33
  %35 = xla_tuple %34
  %v36 = vmul.f32 %v31, %v33
  %37 = xla_tuple %v36
  %s38 = scalar_lea.vmem %s2, 24
  %39 = vst [vmem:[%s38] sm:$0xff] %v36
  %s40 = scalar_lea.vmem %s0, 32
  %v41 = vld [vmem:[%s40] sm:$0xff]
  %s42 = scalar_lea.vmem %s1, 32
  %v43 = vld [vmem:[%s42] sm:$0xff]
  %44 = xla_tuple %v41, %v43
  %45 = xla_tuple %44
  %v46 = vmul.f32 %v41, %v43
  %47 = xla_tuple %v46
  %s48 = scalar_lea.vmem %s2, 32
  %49 = vst [vmem:[%s48] sm:$0xff] %v46
  %s50 = scalar_lea.vmem %s0, 40
  %v51 = vld [vmem:[%s50] sm:$0xff]
  %s52 = scalar_lea.vmem %s1, 40
  %v53 = vld [vmem:[%s52] sm:$0xff]
  %54 = xla_tuple %v51, %v53
  %55 = xla_tuple %54
  %v56 = vmul.f32 %v51, %v53
  %57 = xla_tuple %v56
  %s58 = scalar_lea.vmem %s2, 40
  %59 = vst [vmem:[%s58] sm:$0xff] %v56
  %s60 = scalar_lea.vmem %s0, 48
  %v61 = vld [vmem:[%s60] sm:$0xff]
  %s62 = scalar_lea.vmem %s1, 48
  %v63 = vld [vmem:[%s62] sm:$0xff]
  %64 = xla_tuple %v61, %v63
  %65 = xla_tuple %64
  %v66 = vmul.f32 %v61, %v63
  %67 = xla_tuple %v66
  %s68 = scalar_lea.vmem %s2, 48
  %69 = vst [vmem:[%s68] sm:$0xff] %v66
  %s70 = scalar_lea.vmem %s0, 56
  %v71 = vld [vmem:[%s70] sm:$0xff]
  %s72 = scalar_lea.vmem %s1, 56
  %v73 = vld [vmem:[%s72] sm:$0xff]
  %74 = xla_tuple %v71, %v73
  %75 = xla_tuple %74
  %v76 = vmul.f32 %v71, %v73
  %77 = xla_tuple %v76
  %s78 = scalar_lea.vmem %s2, 56
  %79 = vst [vmem:[%s78] sm:$0xff] %v76

// kernel: made_forward.1
$region0: #{made_forward.1}
  #allocation0 [shape = 'u32[]', space=smem, size = 0x4, offset = 0x4, fixed_abs, tag = 'smem constant byte address 0x4 - core index']
  #allocation1 [shape = 'u32[72,128]{1,0:T(1,128)}', space=vmem, size = 0x9000, scoped, tag = 'internal scratch']
  %s0 = inlined_call_operand.vmem [shape: f32[16,128], index: 0, kind: input, shape index: {}]
  %s1 = inlined_call_operand.vmem [shape: f32[128,128], index: 1, kind: input, shape index: {}]
  %s2 = inlined_call_operand.vmem [shape: f32[1,128], index: 2, kind: input, shape index: {}]
  %s3 = inlined_call_operand.vmem [shape: f32[128,128], index: 3, kind: input, shape index: {}]
  %s4 = inlined_call_operand.vmem [shape: f32[1,128], index: 4, kind: input, shape index: {}]
  %s5 = inlined_call_operand.vmem [shape: f32[128,128], index: 5, kind: input, shape index: {}]
  %s6 = inlined_call_operand.vmem [shape: f32[1,128], index: 6, kind: input, shape index: {}]
  %s7 = inlined_call_operand.vmem [shape: f32[16,128], index: 7, kind: output, shape index: {}]
  %s8 = sld [smem:[#allocation0]]
  $region38: #{made_forward.1} parent=0
    _
  %s10 = ssub.s32 1, %s8
  %s11 = scalar_select 0, %s10, %s8
  // Predicated region
  $region2: #{made_forward.1} parent=0 // pred_check
    _
  $region3: #{made_forward.1} parent=0 // pred_check_branch
    %13 = sbr.rel (0) target = $region5
  $region4: #{made_forward.1} parent=0 // pred_region
    _
  $region5: #{made_forward.1} parent=0 // pred_fallthru
    _
  // Predicated region
  $region6: #{made_forward.1} parent=0 // pred_check
    _
  $region7: #{made_forward.1} parent=0 // pred_check_branch
    %15 = sbr.rel (0) target = $region9
  $region8: #{made_forward.1} parent=0 // pred_region
    _
  $region9: #{made_forward.1} parent=0 // pred_fallthru
    _
  // Predicated region
  $region10: #{made_forward.1} parent=0 // pred_check
    _
  $region11: #{made_forward.1} parent=0 // pred_check_branch
    %17 = sbr.rel (0) target = $region13
  $region12: #{made_forward.1} parent=0 // pred_region
    _
  $region13: #{made_forward.1} parent=0 // pred_fallthru
    _
  // Predicated region
  $region14: #{made_forward.1} parent=0 // pred_check
    _
  $region15: #{made_forward.1} parent=0 // pred_check_branch
    %19 = sbr.rel (0) target = $region17
  $region16: #{made_forward.1} parent=0 // pred_region
    _
  $region17: #{made_forward.1} parent=0 // pred_fallthru
    _
  // Predicated region
  $region18: #{made_forward.1} parent=0 // pred_check
    _
  $region19: #{made_forward.1} parent=0 // pred_check_branch
    %21 = sbr.rel (0) target = $region21
  $region20: #{made_forward.1} parent=0 // pred_region
    _
  $region21: #{made_forward.1} parent=0 // pred_fallthru
    _
  // Predicated region
  $region22: #{made_forward.1} parent=0 // pred_check
    _
  $region23: #{made_forward.1} parent=0 // pred_check_branch
    %23 = sbr.rel (0) target = $region25
  $region24: #{made_forward.1} parent=0 // pred_region
    _
  $region25: #{made_forward.1} parent=0 // pred_fallthru
    _
  // Predicated region
  $region26: #{made_forward.1} parent=0 // pred_check
    _
  $region27: #{made_forward.1} parent=0 // pred_check_branch
    %25 = sbr.rel (0) target = $region29
  $region28: #{made_forward.1} parent=0 // pred_region
    _
  $region29: #{made_forward.1} parent=0 // pred_fallthru
    _
  %v26 = vld [vmem:[%s0] sm:$0xff]
  %v27 = vld [vmem:[%s0 + $0x8] sm:$0xff]
  %v28 = vld [vmem:[%s1] sm:$0xff]
  %v29 = vld [vmem:[%s1 + $0x8] sm:$0xff]
  %v30 = vld [vmem:[%s1 + $0x10] sm:$0xff]
  %v31 = vld [vmem:[%s1 + $0x18] sm:$0xff]
  %v32 = vld [vmem:[%s1 + $0x20] sm:$0xff]
  %v33 = vld [vmem:[%s1 + $0x28] sm:$0xff]
  %v34 = vld [vmem:[%s1 + $0x30] sm:$0xff]
  %v35 = vld [vmem:[%s1 + $0x38] sm:$0xff]
  %v36 = vld [vmem:[%s1 + $0x40] sm:$0xff]
  %v37 = vld [vmem:[%s1 + $0x48] sm:$0xff]
  %v38 = vld [vmem:[%s1 + $0x50] sm:$0xff]
  %v39 = vld [vmem:[%s1 + $0x58] sm:$0xff]
  %v40 = vld [vmem:[%s1 + $0x60] sm:$0xff]
  %v41 = vld [vmem:[%s1 + $0x68] sm:$0xff]
  %v42 = vld [vmem:[%s1 + $0x70] sm:$0xff]
  %v43 = vld [vmem:[%s1 + $0x78] sm:$0xff]
  %v44 = vld [vmem:[%s2] sm:$0x1]
  %v46 = vperm.slane %v44, 0
  %48 = vmatpush.msra.mxu0 %v43
  %49 = vmatpush.msra.mxu0 %v42
  %50 = vmatpush.msra.mxu0 %v41
  %51 = vmatpush.msra.mxu0 %v40
  %52 = vmatpush.msra.mxu0 %v39
  %53 = vmatpush.msra.mxu0 %v38
  %54 = vmatpush.msra.mxu0 %v37
  %55 = vmatpush.msra.mxu0 %v36
  %56 = vmatpush.msra.mxu0 %v35
  %57 = vmatpush.msra.mxu0 %v34
  %58 = vmatpush.msra.mxu0 %v33
  %59 = vmatpush.msra.mxu0 %v32
  %60 = vmatpush.msra.mxu0 %v31
  %61 = vmatpush.msra.mxu0 %v30
  %62 = vmatpush.msra.mxu0 %v29
  %63 = vmatpush.msra.mxu0 %v28
  %64 = vmatmul.f32.gmra.mxu0 %v26
  %v65 = vpop.f32.mrf.mxu0
  %v66 = vadd.f32 %v46, %v65
  %67 = vmatmul.f32.gmra.mxu0 %v27
  %v68 = vpop.f32.mrf.mxu0
  %v69 = vadd.f32 %v46, %v68
  %70 = vdwg.mxu0
  %v71 = vmax.f32 %v66, 0.0
  %v72 = vmax.f32 %v69, 0.0
  %v73 = vld [vmem:[%s3] sm:$0xff]
  %v74 = vld [vmem:[%s3 + $0x8] sm:$0xff]
  %v75 = vld [vmem:[%s3 + $0x10] sm:$0xff]
  %v76 = vld [vmem:[%s3 + $0x18] sm:$0xff]
  %v77 = vld [vmem:[%s3 + $0x20] sm:$0xff]
  %v78 = vld [vmem:[%s3 + $0x28] sm:$0xff]
  %v79 = vld [vmem:[%s3 + $0x30] sm:$0xff]
  %v80 = vld [vmem:[%s3 + $0x38] sm:$0xff]
  %v81 = vld [vmem:[%s3 + $0x40] sm:$0xff]
  %v82 = vld [vmem:[%s3 + $0x48] sm:$0xff]
  %v83 = vld [vmem:[%s3 + $0x50] sm:$0xff]
  %v84 = vld [vmem:[%s3 + $0x58] sm:$0xff]
  %v85 = vld [vmem:[%s3 + $0x60] sm:$0xff]
  %v86 = vld [vmem:[%s3 + $0x68] sm:$0xff]
  %v87 = vld [vmem:[%s3 + $0x70] sm:$0xff]
  %v88 = vld [vmem:[%s3 + $0x78] sm:$0xff]
  %v89 = vld [vmem:[%s4] sm:$0x1]
  %v91 = vperm.slane %v89, 0
  %93 = vmatpush.msra.mxu0 %v88
  %94 = vmatpush.msra.mxu0 %v87
  %95 = vmatpush.msra.mxu0 %v86
  %96 = vmatpush.msra.mxu0 %v85
  %97 = vmatpush.msra.mxu0 %v84
  %98 = vmatpush.msra.mxu0 %v83
  %99 = vmatpush.msra.mxu0 %v82
  %100 = vmatpush.msra.mxu0 %v81
  %101 = vmatpush.msra.mxu0 %v80
  %102 = vmatpush.msra.mxu0 %v79
  %103 = vmatpush.msra.mxu0 %v78
  %104 = vmatpush.msra.mxu0 %v77
  %105 = vmatpush.msra.mxu0 %v76
  %106 = vmatpush.msra.mxu0 %v75
  %107 = vmatpush.msra.mxu0 %v74
  %108 = vmatpush.msra.mxu0 %v73
  %109 = vmatmul.f32.gmra.mxu0 %v71
  %v110 = vpop.f32.mrf.mxu0
  %v111 = vadd.f32 %v91, %v110
  %112 = vmatmul.f32.gmra.mxu0 %v72
  %v113 = vpop.f32.mrf.mxu0
  %v114 = vadd.f32 %v91, %v113
  %115 = vdwg.mxu0
  %v116 = vmax.f32 %v111, 0.0
  %v117 = vmax.f32 %v114, 0.0
  %v118 = vld [vmem:[%s5] sm:$0xff]
  %v119 = vld [vmem:[%s5 + $0x8] sm:$0xff]
  %v120 = vld [vmem:[%s5 + $0x10] sm:$0xff]
  %v121 = vld [vmem:[%s5 + $0x18] sm:$0xff]
  %v122 = vld [vmem:[%s5 + $0x20] sm:$0xff]
  %v123 = vld [vmem:[%s5 + $0x28] sm:$0xff]
  %v124 = vld [vmem:[%s5 + $0x30] sm:$0xff]
  %v125 = vld [vmem:[%s5 + $0x38] sm:$0xff]
  %v126 = vld [vmem:[%s5 + $0x40] sm:$0xff]
  %v127 = vld [vmem:[%s5 + $0x48] sm:$0xff]
  %v128 = vld [vmem:[%s5 + $0x50] sm:$0xff]
  %v129 = vld [vmem:[%s5 + $0x58] sm:$0xff]
  %v130 = vld [vmem:[%s5 + $0x60] sm:$0xff]
  %v131 = vld [vmem:[%s5 + $0x68] sm:$0xff]
  %v132 = vld [vmem:[%s5 + $0x70] sm:$0xff]
  %v133 = vld [vmem:[%s5 + $0x78] sm:$0xff]
  %v134 = vld [vmem:[%s6] sm:$0x1]
  %v136 = vperm.slane %v134, 0
  %138 = vmatpush.msra.mxu0 %v133
  %139 = vmatpush.msra.mxu0 %v132
  %140 = vmatpush.msra.mxu0 %v131
  %141 = vmatpush.msra.mxu0 %v130
  %142 = vmatpush.msra.mxu0 %v129
  %143 = vmatpush.msra.mxu0 %v128
  %144 = vmatpush.msra.mxu0 %v127
  %145 = vmatpush.msra.mxu0 %v126
  %146 = vmatpush.msra.mxu0 %v125
  %147 = vmatpush.msra.mxu0 %v124
  %148 = vmatpush.msra.mxu0 %v123
  %149 = vmatpush.msra.mxu0 %v122
  %150 = vmatpush.msra.mxu0 %v121
  %151 = vmatpush.msra.mxu0 %v120
  %152 = vmatpush.msra.mxu0 %v119
  %153 = vmatpush.msra.mxu0 %v118
  %154 = vmatmul.f32.gmra.mxu0 %v116
  %v155 = vpop.f32.mrf.mxu0
  %v156 = vadd.f32 %v136, %v155
  %157 = vmatmul.f32.gmra.mxu0 %v117
  %v158 = vpop.f32.mrf.mxu0
  %v159 = vadd.f32 %v136, %v158
  %160 = vdwg.mxu0
  %161 = vst [vmem:[%s7] sm:$0xff] %v156
  %162 = vst [vmem:[%s7 + $0x8] sm:$0xff] %v159
  // Predicated region
  $region30: #{made_forward.1} parent=0 // pred_check
    _
  $region31: #{made_forward.1} parent=0 // pred_check_branch
    %164 = sbr.rel (0) target = $region33
  $region32: #{made_forward.1} parent=0 // pred_region
    _
  $region33: #{made_forward.1} parent=0 // pred_fallthru
    _
  // Predicated region
  $region34: #{made_forward.1} parent=0 // pred_check
    _
  $region35: #{made_forward.1} parent=0 // pred_check_branch
    %166 = sbr.rel (0) target = $region37
  $region36: #{made_forward.1} parent=0 // pred_region
    _
  $region37: #{made_forward.1} parent=0 // pred_fallthru
    _

</llo_original>
